<compile_context>
chip_gen: v5e
topology: v5e:2x2
jax: 0.10.0
libtpu: 0.0.40
codegen_flags: <defaults>
</compile_context>

<pallas_src>
import functools

import jax
import jax.numpy as jnp
from jax.experimental import pallas as pl
from jax.experimental.pallas import tpu as pltpu

IN_FEATURES = 5
OUT_FEATURES = 2
LANE_MIN = 128          # lane granularity (hardware lane width)
MAX_LANE_TILE = 16384   # 16K lanes: ~0.5 MiB/input tile f32, ~2 MiB w/ dbl-buf


def _pick_lane_tile(b128: int) -> int:
    """Choose a batch (lane) tile size.

    b128 is the batch rounded up to a multiple of 128.  Small batches get a
    single tile (overhead is already minimal); large batches get tiles of up
    to MAX_LANE_TILE lanes, preferring >= 2 tiles so the "parallel" grid axis
    can shard across both TensorCores on v7x.
    """
    if b128 <= 2 * LANE_MIN:
        return b128
    # Aim for ~half the batch per tile (>= 2 tiles), capped at MAX_LANE_TILE.
    half = pl.cdiv(b128 // 2, LANE_MIN) * LANE_MIN
    return int(min(MAX_LANE_TILE, max(LANE_MIN, half)))


def _linear_kernel(w_ref, b_ref, xT_ref, o_ref):
    # w_ref: (OUT, IN) f32 in SMEM (PyTorch layout, read as scalars)
    # b_ref: (OUT,)    f32 in SMEM
    # xT_ref: (IN, TB) f32 in VMEM   -- batch on lanes
    # o_ref:  (OUT, TB) f32 in VMEM  -- lane-dense output
    x = xT_ref[...]  # (IN, TB)
    rows = []
    for o in range(OUT_FEATURES):
        acc = x[0:1, :] * w_ref[o, 0]
        for k in range(1, IN_FEATURES):
            acc = acc + x[k:k + 1, :] * w_ref[o, k]
        rows.append(acc + b_ref[o])
    # Single dense store of the whole (OUT, TB) tile (no per-row masked vst).
    o_ref[...] = jnp.concatenate(rows, axis=0)


@functools.partial(jax.jit, static_argnames=())
def linear_flatten(x, weight, bias):
    """Computes (x @ weight.T + bias).reshape(-1) with the math in Pallas.

    x:      (B, IN_FEATURES)             float32
    weight: (OUT_FEATURES, IN_FEATURES)  (PyTorch nn.Linear layout)
    bias:   (OUT_FEATURES,)
    returns (B * OUT_FEATURES,)          row-major flatten, matching aa.view(-1)
    """
    B = x.shape[0]
    b128 = pl.cdiv(B, LANE_MIN) * LANE_MIN
    lane_tile = _pick_lane_tile(b128)
    n_tiles = pl.cdiv(b128, lane_tile)
    b_pad = n_tiles * lane_tile

    # Layout plumbing (fused into this jit, cheap relative to dispatch):
    # batch onto the lane axis, padded to a multiple of the lane tile.
    xT = jnp.pad(x.T, ((0, 0), (0, b_pad - B)))  # (IN, b_pad)

    # Advisory cost: 10 FMAs and ~28 bytes (20 in + 8 out) per batch element.
    cost = pl.CostEstimate(
        flops=2 * IN_FEATURES * OUT_FEATURES * b_pad,
        transcendentals=0,
        bytes_accessed=(IN_FEATURES + OUT_FEATURES) * 4 * b_pad,
    )

    yT = pl.pallas_call(
        _linear_kernel,
        out_shape=jax.ShapeDtypeStruct((OUT_FEATURES, b_pad), jnp.float32),
        grid_spec=pltpu.PrefetchScalarGridSpec(
            num_scalar_prefetch=0,
            grid=(n_tiles,),
            in_specs=[
                # Tiny parameters live in SMEM: no VMEM DMA streams,
                # no double-buffer allocation, scalar-broadcast reads.
                pl.BlockSpec(memory_space=pltpu.MemorySpace.SMEM),
                pl.BlockSpec(memory_space=pltpu.MemorySpace.SMEM),
                # Activations: (IN, TB) tile, batch on lanes.
                pl.BlockSpec((IN_FEATURES, lane_tile), lambda i: (0, i)),
            ],
            out_specs=pl.BlockSpec((OUT_FEATURES, lane_tile), lambda i: (0, i)),
        ),
        compiler_params=pltpu.CompilerParams(
            dimension_semantics=("parallel",),
        ),
        cost_estimate=cost,
    )(weight, bias, xT)

    # Back to PyTorch view: (OUT, B_pad) -> (B, OUT) -> flatten row-major.
    # TODO(synk): PyTorch's `print(aa.shape)` is a trace-time Python side
    # effect and is intentionally not reproduced in the compute path.
    return yT[:, :B].T.reshape(-1)


if __name__ == "__main__":
    key = jax.random.PRNGKey(0)
    kx, kw, kb, kx2 = jax.random.split(key, 4)

    # Deterministic parameter init (PyTorch-style uniform +-1/sqrt(fan_in))
    bound = 1.0 / (IN_FEATURES ** 0.5)
    weight = jax.random.uniform(
        kw, (OUT_FEATURES, IN_FEATURES), minval=-bound, maxval=bound,
        dtype=jnp.float32)
    bias = jax.random.uniform(
        kb, (OUT_FEATURES,), minval=-bound, maxval=bound, dtype=jnp.float32)

    # Small batch consistent with Linear(5, 2): x is (8, 5)
    B = 8
    x = jax.random.normal(kx, (B, IN_FEATURES), dtype=jnp.float32)
    out = linear_flatten(x, weight, bias)
    jax.block_until_ready(out)
    ref = (x @ weight.T + bias).reshape(-1)
    assert out.shape == (B * OUT_FEATURES,)
    assert jnp.allclose(out, ref, atol=1e-5, rtol=1e-5)

    # Second check exercising the multi-tile (>=2 grid steps) path.
    B2 = 384
    x2 = jax.random.normal(kx2, (B2, IN_FEATURES), dtype=jnp.float32)
    out2 = linear_flatten(x2, weight, bias)
    jax.block_until_ready(out2)
    ref2 = (x2 @ weight.T + bias).reshape(-1)
    assert out2.shape == (B2 * OUT_FEATURES,)
    assert jnp.allclose(out2, ref2, atol=1e-5, rtol=1e-5)

    print("KERNEL_OK")
</pallas_src>

<mosaic_0001>
module attributes {stable_mosaic.version = 11 : i64} {
  func.func @_linear_kernel(%arg0: i32, %arg1: memref<2x5xf32, #tpu.memory_space<smem>>, %arg2: memref<2xf32, #tpu.memory_space<smem>>, %arg3: memref<5x128xf32, #tpu.memory_space<vmem>>, %arg4: memref<2x128xf32, #tpu.memory_space<vmem>>) attributes {dimension_semantics = [#tpu.dimension_semantics<parallel>], iteration_bounds = array<i64: 1>, scalar_prefetch = 0 : i64, scratch_operands = 0 : i64, tpu.core_type = #tpu.core_type<tc>, window_params = [{transform_indices = @transform_0, window_bounds = array<i64: 2, 5>}, {transform_indices = @transform_1, window_bounds = array<i64: 2>}, {transform_indices = @transform_2, window_bounds = array<i64: 5, 128>}, {transform_indices = @transform_3, window_bounds = array<i64: 2, 128>}]} {
    %c0 = arith.constant 0 : index
    %c0_0 = arith.constant 0 : index
    %0 = vector.load %arg3[%c0, %c0_0] : memref<5x128xf32, #tpu.memory_space<vmem>>, vector<5x128xf32>
    %1 = vector.extract_strided_slice %0 {offsets = [0, 0], sizes = [1, 128], strides = [1, 1]} : vector<5x128xf32> to vector<1x128xf32>
    %c0_1 = arith.constant 0 : index
    %c0_2 = arith.constant 0 : index
    %2 = memref.load %arg1[%c0_1, %c0_2] : memref<2x5xf32, #tpu.memory_space<smem>>
    %3 = vector.broadcast %2 : f32 to vector<1x128xf32>
    %4 = arith.mulf %1, %3 : vector<1x128xf32>
    %5 = vector.extract_strided_slice %0 {offsets = [1, 0], sizes = [1, 128], strides = [1, 1]} : vector<5x128xf32> to vector<1x128xf32>
    %c0_3 = arith.constant 0 : index
    %c1 = arith.constant 1 : index
    %6 = memref.load %arg1[%c0_3, %c1] : memref<2x5xf32, #tpu.memory_space<smem>>
    %7 = vector.broadcast %6 : f32 to vector<1x128xf32>
    %8 = arith.mulf %5, %7 : vector<1x128xf32>
    %9 = arith.addf %4, %8 : vector<1x128xf32>
    %10 = vector.extract_strided_slice %0 {offsets = [2, 0], sizes = [1, 128], strides = [1, 1]} : vector<5x128xf32> to vector<1x128xf32>
    %c0_4 = arith.constant 0 : index
    %c2 = arith.constant 2 : index
    %11 = memref.load %arg1[%c0_4, %c2] : memref<2x5xf32, #tpu.memory_space<smem>>
    %12 = vector.broadcast %11 : f32 to vector<1x128xf32>
    %13 = arith.mulf %10, %12 : vector<1x128xf32>
    %14 = arith.addf %9, %13 : vector<1x128xf32>
    %15 = vector.extract_strided_slice %0 {offsets = [3, 0], sizes = [1, 128], strides = [1, 1]} : vector<5x128xf32> to vector<1x128xf32>
    %c0_5 = arith.constant 0 : index
    %c3 = arith.constant 3 : index
    %16 = memref.load %arg1[%c0_5, %c3] : memref<2x5xf32, #tpu.memory_space<smem>>
    %17 = vector.broadcast %16 : f32 to vector<1x128xf32>
    %18 = arith.mulf %15, %17 : vector<1x128xf32>
    %19 = arith.addf %14, %18 : vector<1x128xf32>
    %20 = vector.extract_strided_slice %0 {offsets = [4, 0], sizes = [1, 128], strides = [1, 1]} : vector<5x128xf32> to vector<1x128xf32>
    %c0_6 = arith.constant 0 : index
    %c4 = arith.constant 4 : index
    %21 = memref.load %arg1[%c0_6, %c4] : memref<2x5xf32, #tpu.memory_space<smem>>
    %22 = vector.broadcast %21 : f32 to vector<1x128xf32>
    %23 = arith.mulf %20, %22 : vector<1x128xf32>
    %24 = arith.addf %19, %23 : vector<1x128xf32>
    %c0_7 = arith.constant 0 : index
    %25 = memref.load %arg2[%c0_7] : memref<2xf32, #tpu.memory_space<smem>>
    %26 = vector.broadcast %25 : f32 to vector<1x128xf32>
    %27 = arith.addf %24, %26 : vector<1x128xf32>
    %28 = vector.extract_strided_slice %0 {offsets = [0, 0], sizes = [1, 128], strides = [1, 1]} : vector<5x128xf32> to vector<1x128xf32>
    %c1_8 = arith.constant 1 : index
    %c0_9 = arith.constant 0 : index
    %29 = memref.load %arg1[%c1_8, %c0_9] : memref<2x5xf32, #tpu.memory_space<smem>>
    %30 = vector.broadcast %29 : f32 to vector<1x128xf32>
    %31 = arith.mulf %28, %30 : vector<1x128xf32>
    %32 = vector.extract_strided_slice %0 {offsets = [1, 0], sizes = [1, 128], strides = [1, 1]} : vector<5x128xf32> to vector<1x128xf32>
    %c1_10 = arith.constant 1 : index
    %c1_11 = arith.constant 1 : index
    %33 = memref.load %arg1[%c1_10, %c1_11] : memref<2x5xf32, #tpu.memory_space<smem>>
    %34 = vector.broadcast %33 : f32 to vector<1x128xf32>
    %35 = arith.mulf %32, %34 : vector<1x128xf32>
    %36 = arith.addf %31, %35 : vector<1x128xf32>
    %37 = vector.extract_strided_slice %0 {offsets = [2, 0], sizes = [1, 128], strides = [1, 1]} : vector<5x128xf32> to vector<1x128xf32>
    %c1_12 = arith.constant 1 : index
    %c2_13 = arith.constant 2 : index
    %38 = memref.load %arg1[%c1_12, %c2_13] : memref<2x5xf32, #tpu.memory_space<smem>>
    %39 = vector.broadcast %38 : f32 to vector<1x128xf32>
    %40 = arith.mulf %37, %39 : vector<1x128xf32>
    %41 = arith.addf %36, %40 : vector<1x128xf32>
    %42 = vector.extract_strided_slice %0 {offsets = [3, 0], sizes = [1, 128], strides = [1, 1]} : vector<5x128xf32> to vector<1x128xf32>
    %c1_14 = arith.constant 1 : index
    %c3_15 = arith.constant 3 : index
    %43 = memref.load %arg1[%c1_14, %c3_15] : memref<2x5xf32, #tpu.memory_space<smem>>
    %44 = vector.broadcast %43 : f32 to vector<1x128xf32>
    %45 = arith.mulf %42, %44 : vector<1x128xf32>
    %46 = arith.addf %41, %45 : vector<1x128xf32>
    %47 = vector.extract_strided_slice %0 {offsets = [4, 0], sizes = [1, 128], strides = [1, 1]} : vector<5x128xf32> to vector<1x128xf32>
    %c1_16 = arith.constant 1 : index
    %c4_17 = arith.constant 4 : index
    %48 = memref.load %arg1[%c1_16, %c4_17] : memref<2x5xf32, #tpu.memory_space<smem>>
    %49 = vector.broadcast %48 : f32 to vector<1x128xf32>
    %50 = arith.mulf %47, %49 : vector<1x128xf32>
    %51 = arith.addf %46, %50 : vector<1x128xf32>
    %c1_18 = arith.constant 1 : index
    %52 = memref.load %arg2[%c1_18] : memref<2xf32, #tpu.memory_space<smem>>
    %53 = vector.broadcast %52 : f32 to vector<1x128xf32>
    %54 = arith.addf %51, %53 : vector<1x128xf32>
    %55 = tpu.concatenate %27, %54 in 0 : vector<1x128xf32>, vector<1x128xf32> -> vector<2x128xf32>
    %c0_19 = arith.constant 0 : index
    %c0_20 = arith.constant 0 : index
    %56 = vector.load %arg4[%c0_19, %c0_20] : memref<2x128xf32, #tpu.memory_space<vmem>>, vector<2x128xf32>
    tpu.vector_store %arg4[%c0_19, %c0_20], %55 {strides = array<i32>} : memref<2x128xf32, #tpu.memory_space<vmem>>, vector<2x128xf32>,
    return
  }
  func.func @transform_0(%arg0: i32) -> (i32, i32) {
    %c0_i32 = arith.constant 0 : i32
    %c0_i32_0 = arith.constant 0 : i32
    %c0_i32_1 = arith.constant 0 : i32
    return %c0_i32, %c0_i32_0 : i32, i32
  }
  func.func @transform_1(%arg0: i32) -> i32 {
    %c0_i32 = arith.constant 0 : i32
    %c0_i32_0 = arith.constant 0 : i32
    return %c0_i32 : i32
  }
  func.func @transform_2(%arg0: i32) -> (i32, i32) {
    %c0_i32 = arith.constant 0 : i32
    %c0_i32_0 = arith.constant 0 : i32
    return %c0_i32, %arg0 : i32, i32
  }
  func.func @transform_3(%arg0: i32) -> (i32, i32) {
    %c0_i32 = arith.constant 0 : i32
    %c0_i32_0 = arith.constant 0 : i32
    return %c0_i32, %arg0 : i32, i32
  }
}

</mosaic_0001>

<llo_original>
// kernel: linear_flatten.1
$region0: #{linear_flatten.1}
  #allocation0 [shape = 'u32[]', space=smem, size = 0x4, offset = 0x4, fixed_abs, tag = 'smem constant byte address 0x4 - core index']
  #allocation1 [shape = 'u32[72,128]{1,0:T(1,128)}', space=vmem, size = 0x9000, scoped, tag = 'internal scratch']
  %s0 = inlined_call_operand.vmem [shape: f32[2,5], index: 0, kind: input, shape index: {}]
  %s1 = inlined_call_operand.vmem [shape: f32[2], index: 1, kind: input, shape index: {}]
  %s2 = inlined_call_operand.vmem [shape: f32[5,128], index: 2, kind: input, shape index: {}]
  %s3 = inlined_call_operand.vmem [shape: f32[2,128], index: 3, kind: output, shape index: {}]
  %s4 = sld [smem:[#allocation0]]
  $region30: #{linear_flatten.1} parent=0
    _
  %s6 = ssub.s32 1, %s4
  %s7 = scalar_select 0, %s6, %s4
  $region1: #{linear_flatten.1} parent=0
    #allocation2 [shape = 'u8[1024]{0}', space=smem, size = 0x400, scoped, tag = 'input window, operand 0, single buffered']
    #allocation3 [shape = 's32[1]{0}', space=sflag, size = 0x4, scoped, tag = 'scoped memory for linear_flatten.1']
    #allocation4 [shape = 'u8[512]{0}', space=smem, size = 0x200, scoped, tag = 'input window, operand 1, single buffered']
    #allocation5 [shape = 's32[1]{0}', space=sflag, size = 0x4, scoped, tag = 'scoped memory for linear_flatten.1']
    %8 = vsyncpa [#allocation3], 0
    %9 = vsyncpa [#allocation5], 0
    // Predicated region
    $region2: #{linear_flatten.1} parent=1 // pred_check
      _
    $region3: #{linear_flatten.1} parent=1 // pred_check_branch
      %11 = sbr.rel (0) target = $region5
    $region4: #{linear_flatten.1} parent=1 // pred_region
      %13 = vsyncadd [#allocation3], 0
      %s15 = sshll.u32 %s0, 4
      %s16 = int_to_ptr.vmem [resolvable:$true] %s15
      %18 = dma.vmem_to_smem %s16, 32, [#allocation2], [#allocation3]
    $region5: #{linear_flatten.1} parent=1 // pred_fallthru
      _
    // Predicated region
    $region6: #{linear_flatten.1} parent=1 // pred_check
      _
    $region7: #{linear_flatten.1} parent=1 // pred_check_branch
      %20 = sbr.rel (0) target = $region9
    $region8: #{linear_flatten.1} parent=1 // pred_region
      %22 = vsyncadd [#allocation5], 0
      %s24 = sshll.u32 %s1, 4
      %s25 = int_to_ptr.vmem [resolvable:$true] %s24
      %27 = dma.vmem_to_smem %s25, 16, [#allocation4], [#allocation5]
    $region9: #{linear_flatten.1} parent=1 // pred_fallthru
      _
    // Predicated region
    $region10: #{linear_flatten.1} parent=1 // pred_check
      _
    $region11: #{linear_flatten.1} parent=1 // pred_check_branch
      %29 = sbr.rel (0) target = $region13
    $region12: #{linear_flatten.1} parent=1 // pred_region
      _
    $region13: #{linear_flatten.1} parent=1 // pred_fallthru
      _
    // Predicated region
    $region14: #{linear_flatten.1} parent=1 // pred_check
      _
    $region15: #{linear_flatten.1} parent=1 // pred_check_branch
      %31 = sbr.rel (0) target = $region17
    $region16: #{linear_flatten.1} parent=1 // pred_region
      %33 = dma.done [#allocation3], 32
    $region17: #{linear_flatten.1} parent=1 // pred_fallthru
      _
    // Predicated region
    $region18: #{linear_flatten.1} parent=1 // pred_check
      _
    $region19: #{linear_flatten.1} parent=1 // pred_check_branch
      %35 = sbr.rel (0) target = $region21
    $region20: #{linear_flatten.1} parent=1 // pred_region
      %37 = dma.done [#allocation5], 16
    $region21: #{linear_flatten.1} parent=1 // pred_fallthru
      _
    %38 = sfence
    %v39 = vld [vmem:[%s2] sm:$0x1f]
    %s40 = sld [smem:[#allocation2]]
    %v41 = vstv %s40
    %v42 = vmul.f32 %v39, %v41
    %s43 = sld [smem:[#allocation2 + $0x1]]
    %v44 = vstv %s43
    %v45 = vmul.f32 %v39, %v44
    %v47 = vrot.slane %v45, 1
    %v49 = vadd.f32 %v42, %v47
    %s50 = sld [smem:[#allocation2 + $0x2]]
    %v51 = vstv %s50
    %v52 = vmul.f32 %v39, %v51
    %v54 = vrot.slane %v52, 2
    %v56 = vadd.f32 %v49, %v54
    %s57 = sld [smem:[#allocation2 + $0x3]]
    %v58 = vstv %s57
    %v59 = vmul.f32 %v39, %v58
    %v61 = vrot.slane %v59, 3
    %v63 = vadd.f32 %v56, %v61
    %s64 = sld [smem:[#allocation2 + $0x4]]
    %v65 = vstv %s64
    %v66 = vmul.f32 %v39, %v65
    %v68 = vrot.slane %v66, 4
    %v70 = vadd.f32 %v63, %v68
    %s71 = sld [smem:[#allocation4]]
    %v72 = vstv %s71
    %v73 = vadd.f32 %v70, %v72
    %s74 = sld [smem:[#allocation2 + $0x80]]
    %v75 = vstv %s74
    %v76 = vmul.f32 %v39, %v75
    %s77 = sld [smem:[#allocation2 + $0x81]]
    %v78 = vstv %s77
    %v79 = vmul.f32 %v39, %v78
    %v81 = vrot.slane %v79, 1
    %v83 = vadd.f32 %v76, %v81
    %s84 = sld [smem:[#allocation2 + $0x82]]
    %v85 = vstv %s84
    %v86 = vmul.f32 %v39, %v85
    %v88 = vrot.slane %v86, 2
    %v90 = vadd.f32 %v83, %v88
    %s91 = sld [smem:[#allocation2 + $0x83]]
    %v92 = vstv %s91
    %v93 = vmul.f32 %v39, %v92
    %v95 = vrot.slane %v93, 3
    %v97 = vadd.f32 %v90, %v95
    %s98 = sld [smem:[#allocation2 + $0x84]]
    %v99 = vstv %s98
    %v100 = vmul.f32 %v39, %v99
    %v102 = vrot.slane %v100, 4
    %v104 = vadd.f32 %v97, %v102
    %s105 = sld [smem:[#allocation4 + $0x1]]
    %v106 = vstv %s105
    %v107 = vadd.f32 %v104, %v106
    %v109 = vrot.slane %v107, 7
    %vm111 = vcmask 1040384
    %v112 = vsel %vm111, %v73, %v109
    %113 = vst [vmem:[%s3] sm:$0x3] %v112
    // Predicated region
    $region22: #{linear_flatten.1} parent=1 // pred_check
      _
    $region23: #{linear_flatten.1} parent=1 // pred_check_branch
      %115 = sbr.rel (0) target = $region25
    $region24: #{linear_flatten.1} parent=1 // pred_region
      _
    $region25: #{linear_flatten.1} parent=1 // pred_fallthru
      _
    // Predicated region
    $region26: #{linear_flatten.1} parent=1 // pred_check
      _
    $region27: #{linear_flatten.1} parent=1 // pred_check_branch
      %117 = sbr.rel (0) target = $region29
    $region28: #{linear_flatten.1} parent=1 // pred_region
      _
    $region29: #{linear_flatten.1} parent=1 // pred_fallthru
      _
    %118 = vsyncpa [#allocation3], 1
    %119 = vsyncpa [#allocation5], 1

</llo_original>
